<compile_context>
chip_gen: v7x
topology: tpu7x:2x2x1
jax: 0.10.0
libtpu: 0.0.40
codegen_flags: <defaults>
</compile_context>

<pallas_src>
import jax
import jax.numpy as jnp
from jax import lax
from jax.experimental import pallas as pl
from jax.experimental.pallas import tpu as pltpu

_TB = 8      # batch rows per grid step (one full sublane group)
_NBUF = 8    # DMA buffer depth for the large-vocab gather fallback


def _round_up(x, m):
    return ((x + m - 1) // m) * m


def _vmem_budget_bytes():
    """Generation-aware VMEM budget (leave ~25% headroom)."""
    cap = 64 * 1024 * 1024  # conservative default (v7x-sized)
    try:
        info = pltpu.get_tpu_info()
        cap = int(getattr(info, "vmem_capacity_bytes", cap))
    except Exception:
        pass
    return max(16 * 1024 * 1024, (cap * 3) // 4)


def _make_resident_kernel(tb, seq):
    """Fast path: whole embedding table resident in VMEM; grid = (Bp // tb,)."""

    def kernel(idx_ref, w_ref, table_ref, out_ref, stack_ref):
        # idx_ref   : (Bp*S,) int32 SMEM  -- clipped word indices (flattened)
        # w_ref     : (Bp*S,) f32   SMEM  -- pre-masked positional weights
        # table_ref : (V, Hp)       VMEM  -- full embedding table (resident)
        # out_ref   : (tb, Hp)      VMEM  -- output block for this batch block
        # stack_ref : (tb, Hp) f32  VMEM  -- staging tile for 8 weighted rows
        i = pl.program_id(0)
        base = i * (tb * seq)
        out_ref[...] = jnp.zeros_like(out_ref)

        @pl.loop(0, seq)
        def _(s):
            # Stage tb weighted rows (fills all 8 sublanes), then one full add.
            for t in range(tb):
                tok = base + t * seq + s
                w = w_ref[tok]
                row = table_ref[pl.ds(idx_ref[tok], 1), :].astype(jnp.float32)
                stack_ref[pl.ds(t, 1), :] = w * row
            out_ref[...] += stack_ref[...]

    return kernel


def _make_gather_kernel(tb, seq, nbuf):
    """Fallback: per-token row DMAs from HBM, nbuf-deep manual pipeline."""
    n_tok = tb * seq

    def kernel(idx_ref, w_ref, table_hbm, out_ref, rowbuf, sem):
        # table_hbm : (V, Hp) in HBM (memory_space=pl.ANY)
        # rowbuf    : (nbuf, 1, Hp) VMEM ; sem : DMA semaphores (nbuf,)
        i = pl.program_id(0)
        base = i * n_tok

        def start_fetch(tok, slot):
            pltpu.make_async_copy(
                table_hbm.at[pl.ds(idx_ref[base + tok], 1), :],
                rowbuf.at[slot],
                sem.at[slot],
            ).start()

        for p in range(nbuf):           # prime the pipeline (n_tok >= nbuf)
            start_fetch(p, p)

        out_ref[...] = jnp.zeros_like(out_ref)

        def body(tok, carry):
            slot = tok % nbuf
            pltpu.make_async_copy(
                table_hbm.at[pl.ds(0, 1), :], rowbuf.at[slot], sem.at[slot]
            ).wait()

            @pl.when(tok + nbuf < n_tok)
            def _():
                start_fetch(tok + nbuf, slot)

            t = tok // seq
            w = w_ref[base + tok]
            out_ref[pl.ds(t, 1), :] += w * rowbuf[slot].astype(jnp.float32)
            return carry

        lax.fori_loop(0, n_tok, body, 0)

    return kernel


def prepare_encoder_params(embed_table, pos_weights, table_dtype=None):
    """One-time parameter prep: pad hidden dim to a lane-dense multiple of 128.

    Pass table_dtype=jnp.bfloat16 to halve table HBM/VMEM traffic (the kernel
    upcasts gathered rows to f32 before accumulating)."""
    V, H = embed_table.shape
    Hp = max(128, _round_up(H, 128))
    table = jnp.asarray(embed_table)
    if table_dtype is not None:
        table = table.astype(table_dtype)
    if Hp != H:
        table = jnp.pad(table, ((0, 0), (0, Hp - H)))
    return {
        "table": table,                                     # (V, Hp)
        "pos_weights": jnp.asarray(pos_weights, jnp.float32),
        "hidden": H,
    }


@jax.jit
def _forward_padded(indices, lengths, table_p, posw):
    B, S = indices.shape
    V, Hp = table_p.shape

    # Pre-masked positional weights: w[b, s] = posw[s] * (s < lengths[b]).
    posw_s = posw[:S].astype(jnp.float32)
    mask = jnp.arange(S, dtype=jnp.int32)[None, :] < lengths.astype(jnp.int32)[:, None]
    w = jnp.where(mask, posw_s[None, :], jnp.float32(0.0))        # (B, S)

    # Keep the row gather in-bounds (torch.nn.Embedding would error on OOB).
    idx = jnp.clip(indices.astype(jnp.int32), 0, V - 1)           # (B, S)

    Bp = _round_up(B, _TB)
    if Bp != B:
        idx = jnp.pad(idx, ((0, Bp - B), (0, 0)))
        w = jnp.pad(w, ((0, Bp - B), (0, 0)))
    idx_flat = idx.reshape(Bp * S)     # flat 1-D SMEM (avoids 2-D SMEM padding blowup)
    w_flat = w.reshape(Bp * S)

    n_blocks = Bp // _TB
    budget = _vmem_budget_bytes()
    table_bytes = V * Hp * table_p.dtype.itemsize
    tile_bytes = _TB * Hp * 4
    # Account for Pallas double-buffering of the table + output + scratch.
    resident_ok = 2 * table_bytes + 4 * tile_bytes <= budget

    compiler_params = pltpu.CompilerParams(
        dimension_semantics=("parallel",),     # megacore sharding on v7x
        vmem_limit_bytes=budget,
    )

    if resident_ok:
        grid_spec = pltpu.PrefetchScalarGridSpec(
            num_scalar_prefetch=2,             # idx, masked weights -> SMEM
            grid=(n_blocks,),
            in_specs=[pl.BlockSpec((V, Hp), lambda i, idx_r, w_r: (0, 0))],
            out_specs=pl.BlockSpec((_TB, Hp), lambda i, idx_r, w_r: (i, 0)),
            scratch_shapes=[pltpu.VMEM((_TB, Hp), jnp.float32)],
        )
        kernel = _make_resident_kernel(_TB, S)
    else:
        nbuf = min(_NBUF, _TB * S)
        grid_spec = pltpu.PrefetchScalarGridSpec(
            num_scalar_prefetch=2,
            grid=(n_blocks,),
            in_specs=[pl.BlockSpec(memory_space=pl.ANY)],   # raw HBM table
            out_specs=pl.BlockSpec((_TB, Hp), lambda i, idx_r, w_r: (i, 0)),
            scratch_shapes=[
                pltpu.VMEM((nbuf, 1, Hp), table_p.dtype),
                pltpu.SemaphoreType.DMA((nbuf,)),
            ],
        )
        kernel = _make_gather_kernel(_TB, S, nbuf)

    return pl.pallas_call(
        kernel,
        out_shape=jax.ShapeDtypeStruct((Bp, Hp), jnp.float32),
        grid_spec=grid_spec,
        compiler_params=compiler_params,
    )(idx_flat, w_flat, table_p)


def sentence_encoder_forward(indices, lengths, params):
    """indices: (B, S) int, lengths: (B,) int, params from prepare_encoder_params
    -> (B, H) f32 sentence encodings."""
    B = indices.shape[0]
    out_p = _forward_padded(indices, lengths, params["table"], params["pos_weights"])
    return out_p[:B, : params["hidden"]]


def reference_forward(indices, lengths, embed_table, pos_weights):
    emb = jnp.take(embed_table, indices, axis=0)                         # (B, S, H)
    S = indices.shape[1]
    mask = (jnp.arange(S)[None, :] < lengths[:, None]).astype(jnp.float32)
    w = pos_weights[:S][None, :] * mask                                  # (B, S)
    return jnp.sum(emb * w[:, :, None], axis=1)


if __name__ == "__main__":
    # Small, deterministic synthetic setup.
    B, S, V, H = 2, 8, 64, 32          # batch, seq (max_words), vocab, hidden
    key = jax.random.PRNGKey(0)
    k_emb, k_pos, k_idx = jax.random.split(key, 3)

    embed_table = jax.random.normal(k_emb, (V, H), dtype=jnp.float32) * 0.1
    pos_weights = jax.random.normal(k_pos, (S,), dtype=jnp.float32) * 0.5 + 1.0
    indices = jax.random.randint(k_idx, (B, S), 0, V, dtype=jnp.int32)
    lengths = jnp.array([5, 8], dtype=jnp.int32)

    params = prepare_encoder_params(embed_table, pos_weights)   # one-time prep
    out = sentence_encoder_forward(indices, lengths, params)
    out = jax.block_until_ready(out)

    ref = reference_forward(indices, lengths, embed_table, pos_weights)
    assert out.shape == (B, H)
    assert jnp.allclose(out, ref, atol=1e-5, rtol=1e-5), "mismatch vs. JAX reference"

    print("KERNEL_OK")
</pallas_src>

<mosaic_0001>
module attributes {stable_mosaic.version = 11 : i64} {
  func.func @kernel(%arg0: i32, %arg1: memref<64xi32, #tpu.memory_space<smem>>, %arg2: memref<64xf32, #tpu.memory_space<smem>>, %arg3: memref<64x128xf32, #tpu.memory_space<vmem>>, %arg4: memref<8x128xf32, #tpu.memory_space<vmem>>, %arg5: memref<8x128xf32, #tpu.memory_space<vmem>>) attributes {dimension_semantics = [#tpu.dimension_semantics<parallel>], iteration_bounds = array<i64: 1>, scalar_prefetch = 2 : i64, scratch_operands = 1 : i64, tpu.core_type = #tpu.core_type<tc>, window_params = [{pipeline_mode = #tpu.pipeline_mode<synchronous>, transform_indices = @transform_0, window_bounds = array<i64: 64, 128>}, {transform_indices = @transform_1, window_bounds = array<i64: 8, 128>}]} {
    %c64_i32 = arith.constant 64 : i32
    %0 = arith.muli %arg0, %c64_i32 : i32
    %cst = arith.constant 0.000000e+00 : f32
    %1 = vector.broadcast %cst : f32 to vector<8x128xf32>
    %c0 = arith.constant 0 : index
    %c0_0 = arith.constant 0 : index
    %2 = vector.load %arg4[%c0, %c0_0] : memref<8x128xf32, #tpu.memory_space<vmem>>, vector<8x128xf32>
    tpu.vector_store %arg4[%c0, %c0_0], %1 {strides = array<i32>} : memref<8x128xf32, #tpu.memory_space<vmem>>, vector<8x128xf32>,
    %c0_i32 = arith.constant 0 : i32
    %c8_i32 = arith.constant 8 : i32
    %3 = arith.addi %c0_i32, %c8_i32 : i32
    %c1_i32 = arith.constant 1 : i32
    scf.for %arg6 = %c0_i32 to %3 step %c1_i32  : i32 {
      %c1_i32_2 = arith.constant 1 : i32
      %4 = arith.muli %arg6, %c1_i32_2 : i32
      %c0_i32_3 = arith.constant 0 : i32
      %5 = arith.addi %c0_i32_3, %4 : i32
      %c0_i32_4 = arith.constant 0 : i32
      %6 = arith.addi %0, %c0_i32_4 : i32
      %7 = arith.addi %6, %5 : i32
      %8 = arith.index_cast %7 : i32 to index
      %9 = memref.load %arg2[%8] : memref<64xf32, #tpu.memory_space<smem>>
      %10 = arith.index_cast %7 : i32 to index
      %11 = memref.load %arg1[%10] : memref<64xi32, #tpu.memory_space<smem>>
      %12 = arith.index_cast %11 : i32 to index
      %c0_5 = arith.constant 0 : index
      %13 = vector.load %arg3[%12, %c0_5] : memref<64x128xf32, #tpu.memory_space<vmem>>, vector<1x128xf32>
      %14 = vector.broadcast %9 : f32 to vector<1x128xf32>
      %15 = arith.mulf %14, %13 : vector<1x128xf32>
      %c0_6 = arith.constant 0 : index
      %c0_7 = arith.constant 0 : index
      %16 = vector.load %arg5[%c0_6, %c0_7] : memref<8x128xf32, #tpu.memory_space<vmem>>, vector<1x128xf32>
      tpu.vector_store %arg5[%c0_6, %c0_7], %15 {strides = array<i32>} : memref<8x128xf32, #tpu.memory_space<vmem>>, vector<1x128xf32>,
      %c8_i32_8 = arith.constant 8 : i32
      %17 = arith.addi %0, %c8_i32_8 : i32
      %18 = arith.addi %17, %5 : i32
      %19 = arith.index_cast %18 : i32 to index
      %20 = memref.load %arg2[%19] : memref<64xf32, #tpu.memory_space<smem>>
      %21 = arith.index_cast %18 : i32 to index
      %22 = memref.load %arg1[%21] : memref<64xi32, #tpu.memory_space<smem>>
      %23 = arith.index_cast %22 : i32 to index
      %c0_9 = arith.constant 0 : index
      %24 = vector.load %arg3[%23, %c0_9] : memref<64x128xf32, #tpu.memory_space<vmem>>, vector<1x128xf32>
      %25 = vector.broadcast %20 : f32 to vector<1x128xf32>
      %26 = arith.mulf %25, %24 : vector<1x128xf32>
      %c1 = arith.constant 1 : index
      %c0_10 = arith.constant 0 : index
      %27 = vector.load %arg5[%c1, %c0_10] : memref<8x128xf32, #tpu.memory_space<vmem>>, vector<1x128xf32>
      tpu.vector_store %arg5[%c1, %c0_10], %26 {strides = array<i32>} : memref<8x128xf32, #tpu.memory_space<vmem>>, vector<1x128xf32>,
      %c16_i32 = arith.constant 16 : i32
      %28 = arith.addi %0, %c16_i32 : i32
      %29 = arith.addi %28, %5 : i32
      %30 = arith.index_cast %29 : i32 to index
      %31 = memref.load %arg2[%30] : memref<64xf32, #tpu.memory_space<smem>>
      %32 = arith.index_cast %29 : i32 to index
      %33 = memref.load %arg1[%32] : memref<64xi32, #tpu.memory_space<smem>>
      %34 = arith.index_cast %33 : i32 to index
      %c0_11 = arith.constant 0 : index
      %35 = vector.load %arg3[%34, %c0_11] : memref<64x128xf32, #tpu.memory_space<vmem>>, vector<1x128xf32>
      %36 = vector.broadcast %31 : f32 to vector<1x128xf32>
      %37 = arith.mulf %36, %35 : vector<1x128xf32>
      %c2 = arith.constant 2 : index
      %c0_12 = arith.constant 0 : index
      %38 = vector.load %arg5[%c2, %c0_12] : memref<8x128xf32, #tpu.memory_space<vmem>>, vector<1x128xf32>
      tpu.vector_store %arg5[%c2, %c0_12], %37 {strides = array<i32>} : memref<8x128xf32, #tpu.memory_space<vmem>>, vector<1x128xf32>,
      %c24_i32 = arith.constant 24 : i32
      %39 = arith.addi %0, %c24_i32 : i32
      %40 = arith.addi %39, %5 : i32
      %41 = arith.index_cast %40 : i32 to index
      %42 = memref.load %arg2[%41] : memref<64xf32, #tpu.memory_space<smem>>
      %43 = arith.index_cast %40 : i32 to index
      %44 = memref.load %arg1[%43] : memref<64xi32, #tpu.memory_space<smem>>
      %45 = arith.index_cast %44 : i32 to index
      %c0_13 = arith.constant 0 : index
      %46 = vector.load %arg3[%45, %c0_13] : memref<64x128xf32, #tpu.memory_space<vmem>>, vector<1x128xf32>
      %47 = vector.broadcast %42 : f32 to vector<1x128xf32>
      %48 = arith.mulf %47, %46 : vector<1x128xf32>
      %c3 = arith.constant 3 : index
      %c0_14 = arith.constant 0 : index
      %49 = vector.load %arg5[%c3, %c0_14] : memref<8x128xf32, #tpu.memory_space<vmem>>, vector<1x128xf32>
      tpu.vector_store %arg5[%c3, %c0_14], %48 {strides = array<i32>} : memref<8x128xf32, #tpu.memory_space<vmem>>, vector<1x128xf32>,
      %c32_i32 = arith.constant 32 : i32
      %50 = arith.addi %0, %c32_i32 : i32
      %51 = arith.addi %50, %5 : i32
      %52 = arith.index_cast %51 : i32 to index
      %53 = memref.load %arg2[%52] : memref<64xf32, #tpu.memory_space<smem>>
      %54 = arith.index_cast %51 : i32 to index
      %55 = memref.load %arg1[%54] : memref<64xi32, #tpu.memory_space<smem>>
      %56 = arith.index_cast %55 : i32 to index
      %c0_15 = arith.constant 0 : index
      %57 = vector.load %arg3[%56, %c0_15] : memref<64x128xf32, #tpu.memory_space<vmem>>, vector<1x128xf32>
      %58 = vector.broadcast %53 : f32 to vector<1x128xf32>
      %59 = arith.mulf %58, %57 : vector<1x128xf32>
      %c4 = arith.constant 4 : index
      %c0_16 = arith.constant 0 : index
      %60 = vector.load %arg5[%c4, %c0_16] : memref<8x128xf32, #tpu.memory_space<vmem>>, vector<1x128xf32>
      tpu.vector_store %arg5[%c4, %c0_16], %59 {strides = array<i32>} : memref<8x128xf32, #tpu.memory_space<vmem>>, vector<1x128xf32>,
      %c40_i32 = arith.constant 40 : i32
      %61 = arith.addi %0, %c40_i32 : i32
      %62 = arith.addi %61, %5 : i32
      %63 = arith.index_cast %62 : i32 to index
      %64 = memref.load %arg2[%63] : memref<64xf32, #tpu.memory_space<smem>>
      %65 = arith.index_cast %62 : i32 to index
      %66 = memref.load %arg1[%65] : memref<64xi32, #tpu.memory_space<smem>>
      %67 = arith.index_cast %66 : i32 to index
      %c0_17 = arith.constant 0 : index
      %68 = vector.load %arg3[%67, %c0_17] : memref<64x128xf32, #tpu.memory_space<vmem>>, vector<1x128xf32>
      %69 = vector.broadcast %64 : f32 to vector<1x128xf32>
      %70 = arith.mulf %69, %68 : vector<1x128xf32>
      %c5 = arith.constant 5 : index
      %c0_18 = arith.constant 0 : index
      %71 = vector.load %arg5[%c5, %c0_18] : memref<8x128xf32, #tpu.memory_space<vmem>>, vector<1x128xf32>
      tpu.vector_store %arg5[%c5, %c0_18], %70 {strides = array<i32>} : memref<8x128xf32, #tpu.memory_space<vmem>>, vector<1x128xf32>,
      %c48_i32 = arith.constant 48 : i32
      %72 = arith.addi %0, %c48_i32 : i32
      %73 = arith.addi %72, %5 : i32
      %74 = arith.index_cast %73 : i32 to index
      %75 = memref.load %arg2[%74] : memref<64xf32, #tpu.memory_space<smem>>
      %76 = arith.index_cast %73 : i32 to index
      %77 = memref.load %arg1[%76] : memref<64xi32, #tpu.memory_space<smem>>
      %78 = arith.index_cast %77 : i32 to index
      %c0_19 = arith.constant 0 : index
      %79 = vector.load %arg3[%78, %c0_19] : memref<64x128xf32, #tpu.memory_space<vmem>>, vector<1x128xf32>
      %80 = vector.broadcast %75 : f32 to vector<1x128xf32>
      %81 = arith.mulf %80, %79 : vector<1x128xf32>
      %c6 = arith.constant 6 : index
      %c0_20 = arith.constant 0 : index
      %82 = vector.load %arg5[%c6, %c0_20] : memref<8x128xf32, #tpu.memory_space<vmem>>, vector<1x128xf32>
      tpu.vector_store %arg5[%c6, %c0_20], %81 {strides = array<i32>} : memref<8x128xf32, #tpu.memory_space<vmem>>, vector<1x128xf32>,
      %c56_i32 = arith.constant 56 : i32
      %83 = arith.addi %0, %c56_i32 : i32
      %84 = arith.addi %83, %5 : i32
      %85 = arith.index_cast %84 : i32 to index
      %86 = memref.load %arg2[%85] : memref<64xf32, #tpu.memory_space<smem>>
      %87 = arith.index_cast %84 : i32 to index
      %88 = memref.load %arg1[%87] : memref<64xi32, #tpu.memory_space<smem>>
      %89 = arith.index_cast %88 : i32 to index
      %c0_21 = arith.constant 0 : index
      %90 = vector.load %arg3[%89, %c0_21] : memref<64x128xf32, #tpu.memory_space<vmem>>, vector<1x128xf32>
      %91 = vector.broadcast %86 : f32 to vector<1x128xf32>
      %92 = arith.mulf %91, %90 : vector<1x128xf32>
      %c7 = arith.constant 7 : index
      %c0_22 = arith.constant 0 : index
      %93 = vector.load %arg5[%c7, %c0_22] : memref<8x128xf32, #tpu.memory_space<vmem>>, vector<1x128xf32>
      tpu.vector_store %arg5[%c7, %c0_22], %92 {strides = array<i32>} : memref<8x128xf32, #tpu.memory_space<vmem>>, vector<1x128xf32>,
      %c0_23 = arith.constant 0 : index
      %c0_24 = arith.constant 0 : index
      %94 = vector.load %arg4[%c0_23, %c0_24] : memref<8x128xf32, #tpu.memory_space<vmem>>, vector<8x128xf32>
      %c0_25 = arith.constant 0 : index
      %c0_26 = arith.constant 0 : index
      %95 = vector.load %arg5[%c0_25, %c0_26] : memref<8x128xf32, #tpu.memory_space<vmem>>, vector<8x128xf32>
      %96 = arith.addf %94, %95 : vector<8x128xf32>
      %c0_27 = arith.constant 0 : index
      %c0_28 = arith.constant 0 : index
      %97 = vector.load %arg4[%c0_27, %c0_28] : memref<8x128xf32, #tpu.memory_space<vmem>>, vector<8x128xf32>
      tpu.vector_store %arg4[%c0_27, %c0_28], %96 {strides = array<i32>} : memref<8x128xf32, #tpu.memory_space<vmem>>, vector<8x128xf32>,
    }
    %c8_i32_1 = arith.constant 8 : i32
    return
  }
  func.func @transform_0(%arg0: i32, %arg1: memref<64xi32, #tpu.memory_space<smem>>, %arg2: memref<64xf32, #tpu.memory_space<smem>>) -> (i32, i32) {
    %c0_i32 = arith.constant 0 : i32
    %c0_i32_0 = arith.constant 0 : i32
    %c0_i32_1 = arith.constant 0 : i32
    return %c0_i32, %c0_i32_0 : i32, i32
  }
  func.func @transform_1(%arg0: i32, %arg1: memref<64xi32, #tpu.memory_space<smem>>, %arg2: memref<64xf32, #tpu.memory_space<smem>>) -> (i32, i32) {
    %c0_i32 = arith.constant 0 : i32
    %c0_i32_0 = arith.constant 0 : i32
    return %arg0, %c0_i32 : i32, i32
  }
}

</mosaic_0001>

<llo_original>
// kernel: _forward_padded.1
$region0: #{_forward_padded.1}
  #allocation0 [shape = 'u32[]', space=smem, size = 0x4, offset = 0x4, fixed_abs, tag = 'smem constant byte address 0x4 - core index']
  #allocation1 [shape = 'u32[144,128]{1,0:T(1,128)}', space=vmem, size = 0x12000, scoped, tag = 'internal scratch']
  #allocation2 [shape = 'f32[8,128]{1,0:T(8,128)}', space=vmem, size = 0x1000, scoped, tag = 'scratch operand']
  #allocation3 [shape = 's32[1]{0}', space=sflag, size = 0x4, scoped, tag = 'scoped memory for _forward_padded.1']
  #allocation4 [shape = 'u8[512]{0}', space=smem, size = 0x200, scoped, tag = 'prefetched SMEM operand 0']
  #allocation5 [shape = 'u8[512]{0}', space=smem, size = 0x200, scoped, tag = 'prefetched SMEM operand 1']
  %s0 = inlined_call_operand.vmem [shape: s32[64], index: 0, kind: input, shape index: {}]
  %s1 = inlined_call_operand.vmem [shape: f32[64], index: 1, kind: input, shape index: {}]
  %s2 = inlined_call_operand.hbm [shape: f32[64,128], index: 2, kind: input, shape index: {}]
  %s3 = inlined_call_operand.hbm [shape: f32[8,128], index: 3, kind: output, shape index: {}]
  %s4 = sld [smem:[#allocation0]]
  $region25: #{_forward_padded.1} parent=0
    _
  %s6 = ssub.s32 1, %s4
  %s7 = scalar_select 0, %s6, %s4
  %s8 = sshll.u32 %s0, 4
  %s9 = int_to_ptr.vmem [resolvable:$true] %s8
  %11 = dma.vmem_to_smem %s9, 16, [#allocation4], [#allocation3]
  %s12 = sshll.u32 %s1, 4
  %s13 = int_to_ptr.vmem [resolvable:$true] %s12
  %15 = dma.vmem_to_smem %s13, 16, [#allocation5], [#allocation3]
  %16 = dma.done [#allocation3], 32
  %17 = sfence
  $region1: #{_forward_padded.1} parent=0
    #allocation6 [shape = 'u8[32768]{0}', space=vmem, size = 0x8000, scoped, tag = 'input window, operand 2, single buffered']
    #allocation7 [shape = 's32[1]{0}', space=sflag, size = 0x4, scoped, tag = 'scoped memory for _forward_padded.1']
    #allocation8 [shape = 's32[1]{0}', space=sflag, size = 0x4, scoped, tag = 'scoped memory for _forward_padded.1']
    #allocation9 [shape = 'u8[4096]{0}', space=vmem, size = 0x1000, scoped, tag = 'output window, operand 0, single buffered']
    %18 = vsyncpa [#allocation7], 0
    %19 = vsyncpa [#allocation8], 0
    // Predicated region
    $region2: #{_forward_padded.1} parent=1 // pred_check
      _
    $region3: #{_forward_padded.1} parent=1 // pred_check_branch
      %21 = sbr.rel (0) target = $region5
    $region4: #{_forward_padded.1} parent=1 // pred_region
      %s23 = ssub.s32 1024, 1024
      %24 = vsyncadd [#allocation7], %s23
      %s25 = sshll.u32 [#allocation6], 4
      %s26 = int_to_ptr.vmem [resolvable:$true] %s25
      %31 = dma.hbm_to_vmem [thread:$0]  %s2, 1024, %s26, [#allocation7], 128, 128, 8
    $region5: #{_forward_padded.1} parent=1 // pred_fallthru
      _
    // Predicated region
    $region6: #{_forward_padded.1} parent=1 // pred_check
      _
    $region7: #{_forward_padded.1} parent=1 // pred_check_branch
      %33 = sbr.rel (0) target = $region9
    $region8: #{_forward_padded.1} parent=1 // pred_region
      %34 = dma.done [#allocation7], 1024
    $region9: #{_forward_padded.1} parent=1 // pred_fallthru
      _
    %s35 = smul.u32 0, 64
    %36 = vst [vmem:[#allocation9] sm:$0xff] 0.0
    loop: start=0, step=1, limit=8
    $region10: #{_forward_padded.1} parent=1 // loop_pre_header
      _
    $region11: #{_forward_padded.1} parent=1 // loop_header
      %s38 = sphi 0, %s42
      %p39 = scmp.ge.s32.totalorder %s38, 8
    $region12: #{_forward_padded.1} parent=1 // loop_header_branch
      %41 = sbr.rel (%p39) target = $region16
    $region13: #{_forward_padded.1} parent=1 // loop_body
      %s43 = sadd.s32 %s35, %s38
      %s44 = sld [smem:[#allocation5 + %s43]]
      %s45 = sld [smem:[#allocation4 + %s43]]
      %s46 = scalar_lea.vmem [#allocation6], %s45
      %v47 = vld [vmem:[%s46] sm:$0x1]
      %v48 = vstv %s44
      %v49 = vmul.f32 %v48, %v47
      %50 = vst [vmem:[#allocation2] sm:$0x1] %v49
      %s51 = sadd.s32 %s35, 8
      %s52 = sadd.s32 %s51, %s38
      %s53 = sld [smem:[#allocation5 + %s52]]
      %s54 = sld [smem:[#allocation4 + %s52]]
      %s55 = scalar_lea.vmem [#allocation6], %s54
      %v56 = vld [vmem:[%s55] sm:$0x1]
      %v57 = vstv %s53
      %v58 = vmul.f32 %v57, %v56
      %59 = vst [vmem:[#allocation2 + $0x1] sm:$0x1] %v58
      %s60 = sadd.s32 %s35, 16
      %s61 = sadd.s32 %s60, %s38
      %s62 = sld [smem:[#allocation5 + %s61]]
      %s63 = sld [smem:[#allocation4 + %s61]]
      %s64 = scalar_lea.vmem [#allocation6], %s63
      %v65 = vld [vmem:[%s64] sm:$0x1]
      %v66 = vstv %s62
      %v67 = vmul.f32 %v66, %v65
      %68 = vst [vmem:[#allocation2 + $0x2] sm:$0x1] %v67
      %s69 = sadd.s32 %s35, 24
      %s70 = sadd.s32 %s69, %s38
      %s71 = sld [smem:[#allocation5 + %s70]]
      %s72 = sld [smem:[#allocation4 + %s70]]
      %s73 = scalar_lea.vmem [#allocation6], %s72
      %v74 = vld [vmem:[%s73] sm:$0x1]
      %v75 = vstv %s71
      %v76 = vmul.f32 %v75, %v74
      %77 = vst [vmem:[#allocation2 + $0x3] sm:$0x1] %v76
      %s78 = sadd.s32 %s35, 32
      %s79 = sadd.s32 %s78, %s38
      %s80 = sld [smem:[#allocation5 + %s79]]
      %s81 = sld [smem:[#allocation4 + %s79]]
      %s82 = scalar_lea.vmem [#allocation6], %s81
      %v83 = vld [vmem:[%s82] sm:$0x1]
      %v84 = vstv %s80
      %v85 = vmul.f32 %v84, %v83
      %86 = vst [vmem:[#allocation2 + $0x4] sm:$0x1] %v85
      %s87 = sadd.s32 %s35, 40
      %s88 = sadd.s32 %s87, %s38
      %s89 = sld [smem:[#allocation5 + %s88]]
      %s90 = sld [smem:[#allocation4 + %s88]]
      %s91 = scalar_lea.vmem [#allocation6], %s90
      %v92 = vld [vmem:[%s91] sm:$0x1]
      %v93 = vstv %s89
      %v94 = vmul.f32 %v93, %v92
      %95 = vst [vmem:[#allocation2 + $0x5] sm:$0x1] %v94
      %s96 = sadd.s32 %s35, 48
      %s97 = sadd.s32 %s96, %s38
      %s98 = sld [smem:[#allocation5 + %s97]]
      %s99 = sld [smem:[#allocation4 + %s97]]
      %s100 = scalar_lea.vmem [#allocation6], %s99
      %v101 = vld [vmem:[%s100] sm:$0x1]
      %v102 = vstv %s98
      %v103 = vmul.f32 %v102, %v101
      %104 = vst [vmem:[#allocation2 + $0x6] sm:$0x1] %v103
      %s105 = sadd.s32 %s35, 56
      %s106 = sadd.s32 %s105, %s38
      %s107 = sld [smem:[#allocation5 + %s106]]
      %s108 = sld [smem:[#allocation4 + %s106]]
      %s109 = scalar_lea.vmem [#allocation6], %s108
      %v110 = vld [vmem:[%s109] sm:$0x1]
      %v111 = vstv %s107
      %v112 = vmul.f32 %v111, %v110
      %113 = vst [vmem:[#allocation2 + $0x7] sm:$0x1] %v112
      %v114 = vld [vmem:[#allocation9] sm:$0xff]
      %v115 = vld [vmem:[#allocation2] sm:$0xff]
      %v116 = vadd.f32 %v114, %v115
      %117 = vst [vmem:[#allocation9] sm:$0xff] %v116
    $region14: #{_forward_padded.1} parent=1 // loop_footer
      %s42 = sadd.s32 1, %s38
    $region15: #{_forward_padded.1} parent=1 // loop_footer_branch
      %37 = sbr.rel target = $region11
    $region16: #{_forward_padded.1} parent=1 // loop_exit
      _
    // Predicated region
    $region17: #{_forward_padded.1} parent=1 // pred_check
      _
    $region18: #{_forward_padded.1} parent=1 // pred_check_branch
      %119 = sbr.rel (0) target = $region20
    $region19: #{_forward_padded.1} parent=1 // pred_region
      %s121 = ssub.s32 128, 128
      %122 = vsyncadd [#allocation8], %s121
      %s124 = sshll.u32 [#allocation9], 4
      %s125 = int_to_ptr.vmem [resolvable:$true] %s124
      %127 = dma.vmem_to_hbm [thread:$0]  %s125, 128, %s3, [#allocation8]
    $region20: #{_forward_padded.1} parent=1 // pred_fallthru
      _
    // Predicated region
    $region21: #{_forward_padded.1} parent=1 // pred_check
      _
    $region22: #{_forward_padded.1} parent=1 // pred_check_branch
      %129 = sbr.rel (0) target = $region24
    $region23: #{_forward_padded.1} parent=1 // pred_region
      %130 = dma.done [#allocation8], 128
    $region24: #{_forward_padded.1} parent=1 // pred_fallthru
      _
    %131 = vsyncpa [#allocation7], 1
    %132 = vsyncpa [#allocation8], 1

</llo_original>
